<compile_context>
chip_gen: v5e
topology: v5e:2x2
jax: 0.10.0
libtpu: 0.0.40
codegen_flags: <defaults>
</compile_context>

<pallas_src>
import numpy as np
import jax
import jax.numpy as jnp
from jax.experimental import pallas as pl
from jax.experimental.pallas import tpu as pltpu

WIRES = 4
ROT = 0.785                      # QLayer.rotation_factor
NSTATES = 16                     # 2**4 basis states
PAIRS = [(i, j) for i in range(WIRES - 1) for j in range(i + 1, WIRES)]

# Packed constant block layout: shape (_CONST_ROWS, _CONST_COLS); every sub-block
# starts at a sublane-aligned (multiple-of-8) row offset and lane 0.
#   rows  0:16, cols 0:16 -> PH : packed phase matrix [A4 | G6 | 0]
#                               PH[b, i]   = coeff of x_i       in phase of basis b
#                               PH[b, 4+p] = coeff of x_i*x_j   (PAIRS order)
#   rows 16:48, cols 0:32 -> UC : [[Ur,-Ui],[Ui,Ur]] real-ified tail unitary
#   rows 48:56, cols 0:32 -> ZF : (1/16)*[Z | Z] readout (rows 4..7 zero)
_CONST_ROWS = 56
_CONST_COLS = 32


def _bit(b, wire):
    # wire 0 is the most-significant bit of the basis index
    return (b >> (WIRES - 1 - wire)) & 1


def _static_const_blocks():
    """Input-independent parts of the packed constant block (numpy, built once)."""
    ph = np.zeros((16, _CONST_COLS), np.float32)
    for b in range(NSTATES):
        for i in range(WIRES):
            ph[b, i] = -0.5 * ROT * (1.0 - 2.0 * _bit(b, i))
        for p, (i, j) in enumerate(PAIRS):
            ph[b, 4 + p] = -0.5 * ROT * (1.0 - 2.0 * (_bit(b, i) ^ _bit(b, j)))
    zf = np.zeros((8, _CONST_COLS), np.float32)
    for c in range(WIRES):
        for b in range(NSTATES):
            z = (1.0 - 2.0 * _bit(b, c)) / 16.0       # 1/16 = |0.25 amplitude|^2
            zf[c, b] = z
            zf[c, 16 + b] = z
    return ph, zf


def _ring_perm():
    """Permutation for the CNOT chain (0,1),(1,2),(2,3),(3,0) applied in order."""
    P = np.eye(NSTATES, dtype=np.float32)
    for (c, t) in [(0, 1), (1, 2), (2, 3), (3, 0)]:
        Pc = np.zeros((NSTATES, NSTATES), np.float32)
        for b in range(NSTATES):
            bits = [_bit(b, w) for w in range(WIRES)]
            bits[t] ^= bits[c]
            b2 = 0
            for w in range(WIRES):
                b2 |= bits[w] << (WIRES - 1 - w)
            Pc[b2, b] = 1.0
        P = Pc @ P
    return P


_CONST_PH, _CONST_ZF = _static_const_blocks()
_RING = _ring_perm()


def _tail_unitary_real(weights_row):
    """Real-ified (32,32) tail unitary [[Ur,-Ui],[Ui,Ur]] built with JAX ops
    (RX layer on all wires followed by the CNOT ring); traceable / jit-able."""
    c = jnp.cos(weights_row / 2.0).astype(jnp.float32)
    s = jnp.sin(weights_row / 2.0).astype(jnp.float32)
    eye = jnp.eye(2, dtype=jnp.float32)
    xmat = jnp.array([[0.0, 1.0], [1.0, 0.0]], jnp.float32)
    kr = jnp.ones((1, 1), jnp.float32)
    ki = jnp.zeros((1, 1), jnp.float32)
    for w in range(WIRES):                     # RX(t) = cos(t/2) I - i sin(t/2) X
        rr = c[w] * eye
        ri = -s[w] * xmat
        kr, ki = (jnp.kron(kr, rr) - jnp.kron(ki, ri),
                  jnp.kron(kr, ri) + jnp.kron(ki, rr))
    ring = jnp.asarray(_RING)
    ur = ring @ kr
    ui = ring @ ki
    return jnp.concatenate(
        [jnp.concatenate([ur, -ui], axis=1),
         jnp.concatenate([ui, ur], axis=1)], axis=0)           # (32, 32)


def _choose_tile(n, target_steps=8, max_tile=512):
    """Lane tile (multiple of 128).  Aim for >= `target_steps` grid steps so the
    2-TensorCore split on v7x stays balanced (ragged/padded tail <= one 128-lane
    tile), and cap the tile at `max_tile` to bound vreg/spill pressure in the
    sincos chain.  VMEM is not the constraint anywhere (per-step footprint well
    under 1 MiB); per-step overhead (~0.35us) is negligible at these step counts."""
    tile = 128 * max(1, -(-n // (128 * target_steps)))
    return min(tile, max_tile)


# ----------------------------------------------------------------------------
# Fused bounded-range sincos (VPU only; TPU has no EUP path for sin/cos)
# ----------------------------------------------------------------------------
_TWO_OVER_PI = 0.6366197723675814
_PIO2_HI = 1.57079637050628662109375     # float32(pi/2), exact in f32
_PIO2_LO = -4.371139000186241e-08        # pi/2 - float32(pi/2)
# cephes sinf/cosf minimax coefficients on [-pi/4, pi/4]
_S1, _S2, _S3 = -1.6666654611e-1, 8.3321608736e-3, -1.9515295891e-4
_C1, _C2, _C3 = 4.166664568298827e-2, -1.388731625493765e-3, 2.443315711809948e-5


def _sincos(phi):
    """cos(phi), sin(phi) with ONE shared Cody-Waite range reduction and two short
    polynomials + quadrant select.  The two-term f32 pi/2 split is accurate for
    |phi| up to ~1e4; the circuit phases here are a few radians for normalized
    image pixels (|phi| <= 0.5*0.785*10*max|x|^2-ish), far inside that range."""
    k = jnp.floor(phi * _TWO_OVER_PI + 0.5)
    r = phi - k * _PIO2_HI
    r = r - k * _PIO2_LO
    r2 = r * r
    sp = r + r * r2 * (_S1 + r2 * (_S2 + r2 * _S3))               # sin(r)
    cp = 1.0 + r2 * (-0.5 + r2 * (_C1 + r2 * (_C2 + r2 * _C3)))   # cos(r)
    q = k.astype(jnp.int32)                                       # quadrant (mod 4)
    swap = (q & 1) == 1
    sin_sign = jnp.where((q & 2) == 0, 1.0, -1.0)
    cos_sign = jnp.where(((q + 1) & 2) == 0, 1.0, -1.0)
    cos_v = jnp.where(swap, sp, cp) * cos_sign
    sin_v = jnp.where(swap, cp, sp) * sin_sign
    return cos_v, sin_v


# ----------------------------------------------------------------------------
# Pallas kernel: per-patch quantum-circuit simulation hot path
# ----------------------------------------------------------------------------
def quanv_kernel(patches_ref, consts_ref, out_ref, feat_ref):
    x = patches_ref[...]                          # (4, T): the 4 pixels of each patch
    T = x.shape[1]

    # Feature block [x0..x3 ; 6 pairwise products ; zeros] built on the VPU into a
    # VMEM scratch (6 vreg muls + masked row stores); feeds ONE phase matmul below.
    feat_ref[0:4, :] = x
    feat_ref[4:5, :] = x[0:1, :] * x[1:2, :]
    feat_ref[5:6, :] = x[0:1, :] * x[2:3, :]
    feat_ref[6:7, :] = x[0:1, :] * x[3:4, :]
    feat_ref[7:8, :] = x[1:2, :] * x[2:3, :]
    feat_ref[8:9, :] = x[1:2, :] * x[3:4, :]
    feat_ref[9:10, :] = x[2:3, :] * x[3:4, :]
    # zero pad rows every step (scratch is per-core on v7x megacore, so no
    # step-0-only init tricks).
    feat_ref[10:16, :] = jnp.zeros((6, T), jnp.float32)

    # Diagonal phase from H + RZ(0.785*x_i) and the CNOT-RZ-CNOT (ZZ) terms:
    # ONE (16,16)@(16,T) matmul with the packed [A4 | G6 | 0] constant.
    ph = consts_ref[0:16, 0:16]
    phi = jnp.dot(ph, feat_ref[...], preferred_element_type=jnp.float32)   # (16, T)

    # State after the data-dependent part: amp_b = 0.25 * exp(i*phi_b); the 1/16
    # probability normalization is folded into ZF, so carry raw cos/sin here.
    cos_v, sin_v = _sincos(phi)
    reim = jnp.concatenate([cos_v, sin_v], axis=0)                         # (32, T)

    # Input-independent tail (RX layer + CNOT ring) as ONE real 32x32 matmul,
    # then Born probabilities + the four <Z_c> readouts fused into ONE matmul.
    uc = consts_ref[16:48, :]
    zf = consts_ref[48:56, :]
    res = jnp.dot(uc, reim, preferred_element_type=jnp.float32)            # (32, T)
    zout = jnp.dot(zf, res * res, preferred_element_type=jnp.float32)      # (8, T)
    out_ref[...] = zout[0:4, :]                                            # <Z_0..Z_3>


# ----------------------------------------------------------------------------
# Wrapper: patch extraction, constant packing, pallas_call, reshape to NCHW
# ----------------------------------------------------------------------------
@jax.jit
def q_conv_layer(image, weights):
    B = image.shape[0]
    assert image.shape[1:] == (1, 28, 28), \
        "Q_Conv_Layer forward expects (B, 1, 28, 28) input"
    # TODO(synk): the Qiskit/PEC noisy-execution machinery and the non-28-pixel
    # `else` branch of the original forward have no Pallas equivalent; this is the
    # exact (noiseless) circuit-expectation path for 28x28 inputs.

    img = image[:, 0].astype(jnp.float32)
    patches = jnp.stack([img[:, 0::2, 0::2], img[:, 0::2, 1::2],
                         img[:, 1::2, 0::2], img[:, 1::2, 1::2]],
                        axis=0).reshape(4, -1)                 # (4, B*196)
    n = B * 14 * 14
    tile = _choose_tile(n)
    n_pad = (-(-n // tile)) * tile
    patches = jnp.pad(patches, ((0, 0), (0, n_pad - n)))       # (4, n_pad)
    # NOTE: padded tail columns (zeros) flow through the circuit and produce
    # nonzero <Z>; they are discarded by the out[:, :n] slice below.

    uc = _tail_unitary_real(weights[0].astype(jnp.float32))    # (32, 32), weight-dependent
    consts = jnp.concatenate(
        [jnp.asarray(_CONST_PH), uc, jnp.asarray(_CONST_ZF)], axis=0)  # (56, 32), all f32

    grid = (n_pad // tile,)
    out = pl.pallas_call(
        quanv_kernel,
        out_shape=jax.ShapeDtypeStruct((4, n_pad), jnp.float32),
        grid_spec=pltpu.PrefetchScalarGridSpec(
            num_scalar_prefetch=0,
            grid=grid,
            in_specs=[
                pl.BlockSpec((4, tile), lambda i: (0, i)),
                # constants: same block every step -> resident in VMEM, no re-fetch
                pl.BlockSpec((_CONST_ROWS, _CONST_COLS), lambda i: (0, 0)),
            ],
            out_specs=pl.BlockSpec((4, tile), lambda i: (0, i)),
            scratch_shapes=[pltpu.VMEM((16, tile), jnp.float32)],   # feature block
        ),
        compiler_params=pltpu.CompilerParams(
            dimension_semantics=("parallel",)),
    )(patches, consts)

    out = out[:, :n].reshape(4, B, 14, 14).transpose(1, 0, 2, 3)   # (B, 4, 14, 14)
    return out


# ----------------------------------------------------------------------------
# Independent numpy reference (gate-by-gate statevector simulation)
# ----------------------------------------------------------------------------
def _ref_forward(image, weights):
    H = np.array([[1, 1], [1, -1]], np.complex128) / np.sqrt(2)
    CN = np.array([[1, 0, 0, 0], [0, 1, 0, 0], [0, 0, 0, 1], [0, 0, 1, 0]],
                  np.complex128)

    def apply1(state, gate, wire):
        s = np.tensordot(gate, state, axes=([1], [wire]))
        return np.moveaxis(s, 0, wire)

    def rz(t):
        return np.diag([np.exp(-0.5j * t), np.exp(0.5j * t)])

    def rx(t):
        c, s = np.cos(t / 2.0), np.sin(t / 2.0)
        return np.array([[c, -1j * s], [-1j * s, c]], np.complex128)

    def apply_cnot(state, ctrl, tgt):
        s = np.moveaxis(state, (ctrl, tgt), (0, 1))
        shp = s.shape
        s = (CN @ s.reshape(4, -1)).reshape(shp)
        return np.moveaxis(s, (0, 1), (ctrl, tgt))

    B = image.shape[0]
    out = np.zeros((B, 4, 14, 14), np.float64)
    w = np.asarray(weights, np.float64)[0]
    zvec = np.array([1.0, -1.0])
    for b in range(B):
        for j in range(0, 28, 2):
            for k in range(0, 28, 2):
                x = [image[b, 0, j, k], image[b, 0, j, k + 1],
                     image[b, 0, j + 1, k], image[b, 0, j + 1, k + 1]]
                state = np.zeros((2, 2, 2, 2), np.complex128)
                state[0, 0, 0, 0] = 1.0
                for i in range(4):
                    state = apply1(state, H, i)
                    state = apply1(state, rz(x[i] * ROT), i)
                for i in range(3):
                    for l in range(i + 1, 4):
                        state = apply_cnot(state, i, l)
                        state = apply1(state, rz(x[i] * x[l] * ROT), l)
                        state = apply_cnot(state, i, l)
                for i in range(4):
                    state = apply1(state, rx(w[i]), i)
                for i in range(3):
                    state = apply_cnot(state, i, i + 1)
                state = apply_cnot(state, 3, 0)
                probs = np.abs(state) ** 2
                for c in range(4):
                    shape = [1, 1, 1, 1]
                    shape[c] = 2
                    out[b, c, j // 2, k // 2] = np.sum(probs * zvec.reshape(shape))
    return out


if __name__ == "__main__":
    key = jax.random.PRNGKey(0)
    k_img, k_w = jax.random.split(key)
    B = 2
    image = jax.random.uniform(k_img, (B, 1, 28, 28), dtype=jnp.float32)       # NCHW
    # BasicEntangler-style weights: shape (1, 4) — one RX angle per wire
    weights = jax.random.uniform(k_w, (1, 4), dtype=jnp.float32,
                                 minval=0.0, maxval=2.0 * np.pi)

    out = jax.block_until_ready(q_conv_layer(image, weights))
    assert out.shape == (B, 4, 14, 14) and out.dtype == jnp.float32

    ref = _ref_forward(np.asarray(image), np.asarray(weights))
    np.testing.assert_allclose(np.asarray(out), ref, atol=2e-4, rtol=1e-3)
    print("KERNEL_OK")
</pallas_src>

<mosaic_0001>
module attributes {stable_mosaic.version = 11 : i64} {
  func.func @quanv_kernel(%arg0: i32, %arg1: memref<4x128xf32, #tpu.memory_space<vmem>>, %arg2: memref<56x32xf32, #tpu.memory_space<vmem>>, %arg3: memref<4x128xf32, #tpu.memory_space<vmem>>, %arg4: memref<16x128xf32, #tpu.memory_space<vmem>>) attributes {dimension_semantics = [#tpu.dimension_semantics<parallel>], iteration_bounds = array<i64: 4>, scalar_prefetch = 0 : i64, scratch_operands = 1 : i64, tpu.core_type = #tpu.core_type<tc>, window_params = [{transform_indices = @transform_0, window_bounds = array<i64: 4, 128>}, {pipeline_mode = #tpu.pipeline_mode<synchronous>, transform_indices = @transform_1, window_bounds = array<i64: 56, 32>}, {transform_indices = @transform_2, window_bounds = array<i64: 4, 128>}]} {
    %c0 = arith.constant 0 : index
    %c0_0 = arith.constant 0 : index
    %0 = vector.load %arg1[%c0, %c0_0] : memref<4x128xf32, #tpu.memory_space<vmem>>, vector<4x128xf32>
    %c0_1 = arith.constant 0 : index
    %c0_2 = arith.constant 0 : index
    %1 = vector.load %arg4[%c0_1, %c0_2] : memref<16x128xf32, #tpu.memory_space<vmem>>, vector<4x128xf32>
    tpu.vector_store %arg4[%c0_1, %c0_2], %0 {strides = array<i32>} : memref<16x128xf32, #tpu.memory_space<vmem>>, vector<4x128xf32>,
    %2 = vector.extract_strided_slice %0 {offsets = [0, 0], sizes = [1, 128], strides = [1, 1]} : vector<4x128xf32> to vector<1x128xf32>
    %3 = vector.extract_strided_slice %0 {offsets = [1, 0], sizes = [1, 128], strides = [1, 1]} : vector<4x128xf32> to vector<1x128xf32>
    %4 = arith.mulf %2, %3 : vector<1x128xf32>
    %c4 = arith.constant 4 : index
    %c0_3 = arith.constant 0 : index
    %5 = vector.load %arg4[%c4, %c0_3] : memref<16x128xf32, #tpu.memory_space<vmem>>, vector<1x128xf32>
    tpu.vector_store %arg4[%c4, %c0_3], %4 {strides = array<i32>} : memref<16x128xf32, #tpu.memory_space<vmem>>, vector<1x128xf32>,
    %6 = vector.extract_strided_slice %0 {offsets = [0, 0], sizes = [1, 128], strides = [1, 1]} : vector<4x128xf32> to vector<1x128xf32>
    %7 = vector.extract_strided_slice %0 {offsets = [2, 0], sizes = [1, 128], strides = [1, 1]} : vector<4x128xf32> to vector<1x128xf32>
    %8 = arith.mulf %6, %7 : vector<1x128xf32>
    %c5 = arith.constant 5 : index
    %c0_4 = arith.constant 0 : index
    %9 = vector.load %arg4[%c5, %c0_4] : memref<16x128xf32, #tpu.memory_space<vmem>>, vector<1x128xf32>
    tpu.vector_store %arg4[%c5, %c0_4], %8 {strides = array<i32>} : memref<16x128xf32, #tpu.memory_space<vmem>>, vector<1x128xf32>,
    %10 = vector.extract_strided_slice %0 {offsets = [0, 0], sizes = [1, 128], strides = [1, 1]} : vector<4x128xf32> to vector<1x128xf32>
    %11 = vector.extract_strided_slice %0 {offsets = [3, 0], sizes = [1, 128], strides = [1, 1]} : vector<4x128xf32> to vector<1x128xf32>
    %12 = arith.mulf %10, %11 : vector<1x128xf32>
    %c6 = arith.constant 6 : index
    %c0_5 = arith.constant 0 : index
    %13 = vector.load %arg4[%c6, %c0_5] : memref<16x128xf32, #tpu.memory_space<vmem>>, vector<1x128xf32>
    tpu.vector_store %arg4[%c6, %c0_5], %12 {strides = array<i32>} : memref<16x128xf32, #tpu.memory_space<vmem>>, vector<1x128xf32>,
    %14 = vector.extract_strided_slice %0 {offsets = [1, 0], sizes = [1, 128], strides = [1, 1]} : vector<4x128xf32> to vector<1x128xf32>
    %15 = vector.extract_strided_slice %0 {offsets = [2, 0], sizes = [1, 128], strides = [1, 1]} : vector<4x128xf32> to vector<1x128xf32>
    %16 = arith.mulf %14, %15 : vector<1x128xf32>
    %c7 = arith.constant 7 : index
    %c0_6 = arith.constant 0 : index
    %17 = vector.load %arg4[%c7, %c0_6] : memref<16x128xf32, #tpu.memory_space<vmem>>, vector<1x128xf32>
    tpu.vector_store %arg4[%c7, %c0_6], %16 {strides = array<i32>} : memref<16x128xf32, #tpu.memory_space<vmem>>, vector<1x128xf32>,
    %18 = vector.extract_strided_slice %0 {offsets = [1, 0], sizes = [1, 128], strides = [1, 1]} : vector<4x128xf32> to vector<1x128xf32>
    %19 = vector.extract_strided_slice %0 {offsets = [3, 0], sizes = [1, 128], strides = [1, 1]} : vector<4x128xf32> to vector<1x128xf32>
    %20 = arith.mulf %18, %19 : vector<1x128xf32>
    %c8 = arith.constant 8 : index
    %c0_7 = arith.constant 0 : index
    %21 = vector.load %arg4[%c8, %c0_7] : memref<16x128xf32, #tpu.memory_space<vmem>>, vector<1x128xf32>
    tpu.vector_store %arg4[%c8, %c0_7], %20 {strides = array<i32>} : memref<16x128xf32, #tpu.memory_space<vmem>>, vector<1x128xf32>,
    %22 = vector.extract_strided_slice %0 {offsets = [2, 0], sizes = [1, 128], strides = [1, 1]} : vector<4x128xf32> to vector<1x128xf32>
    %23 = vector.extract_strided_slice %0 {offsets = [3, 0], sizes = [1, 128], strides = [1, 1]} : vector<4x128xf32> to vector<1x128xf32>
    %24 = arith.mulf %22, %23 : vector<1x128xf32>
    %c9 = arith.constant 9 : index
    %c0_8 = arith.constant 0 : index
    %25 = vector.load %arg4[%c9, %c0_8] : memref<16x128xf32, #tpu.memory_space<vmem>>, vector<1x128xf32>
    tpu.vector_store %arg4[%c9, %c0_8], %24 {strides = array<i32>} : memref<16x128xf32, #tpu.memory_space<vmem>>, vector<1x128xf32>,
    %cst = arith.constant 0.000000e+00 : f32
    %26 = vector.broadcast %cst : f32 to vector<6x128xf32>
    %c10 = arith.constant 10 : index
    %c0_9 = arith.constant 0 : index
    %27 = vector.load %arg4[%c10, %c0_9] : memref<16x128xf32, #tpu.memory_space<vmem>>, vector<6x128xf32>
    tpu.vector_store %arg4[%c10, %c0_9], %26 {strides = array<i32>} : memref<16x128xf32, #tpu.memory_space<vmem>>, vector<6x128xf32>,
    %c0_10 = arith.constant 0 : index
    %c0_11 = arith.constant 0 : index
    %28 = vector.load %arg2[%c0_10, %c0_11] : memref<56x32xf32, #tpu.memory_space<vmem>>, vector<16x16xf32>
    %c0_12 = arith.constant 0 : index
    %c0_13 = arith.constant 0 : index
    %29 = vector.load %arg4[%c0_12, %c0_13] : memref<16x128xf32, #tpu.memory_space<vmem>>, vector<16x128xf32>
    %cst_14 = arith.constant dense<0.000000e+00> : vector<16x128xf32>
    %30 = tpu.matmul %28, %29, %cst_14 {dimension_numbers = #tpu.dot_dimension_numbers<[1], [0], [0], [1], [0, 0, 1, 1], [], []>} : vector<16x16xf32>, vector<16x128xf32>, vector<16x128xf32> -> vector<16x128xf32>
    %cst_15 = arith.constant 0.636619746 : f32
    %31 = vector.broadcast %cst_15 : f32 to vector<16x128xf32>
    %32 = arith.mulf %30, %31 : vector<16x128xf32>
    %cst_16 = arith.constant 5.000000e-01 : f32
    %33 = vector.broadcast %cst_16 : f32 to vector<16x128xf32>
    %34 = arith.addf %32, %33 : vector<16x128xf32>
    %35 = math.floor %34 : vector<16x128xf32>
    %cst_17 = arith.constant 1.57079637 : f32
    %36 = vector.broadcast %cst_17 : f32 to vector<16x128xf32>
    %37 = arith.mulf %35, %36 : vector<16x128xf32>
    %38 = arith.subf %30, %37 : vector<16x128xf32>
    %cst_18 = arith.constant -4.37113883E-8 : f32
    %39 = vector.broadcast %cst_18 : f32 to vector<16x128xf32>
    %40 = arith.mulf %35, %39 : vector<16x128xf32>
    %41 = arith.subf %38, %40 : vector<16x128xf32>
    %42 = arith.mulf %41, %41 : vector<16x128xf32>
    %43 = arith.mulf %41, %42 : vector<16x128xf32>
    %cst_19 = arith.constant -1.95152956E-4 : f32
    %44 = vector.broadcast %cst_19 : f32 to vector<16x128xf32>
    %45 = arith.mulf %42, %44 : vector<16x128xf32>
    %cst_20 = arith.constant 0.00833216123 : f32
    %46 = vector.broadcast %cst_20 : f32 to vector<16x128xf32>
    %47 = arith.addf %46, %45 : vector<16x128xf32>
    %48 = arith.mulf %42, %47 : vector<16x128xf32>
    %cst_21 = arith.constant -0.166666552 : f32
    %49 = vector.broadcast %cst_21 : f32 to vector<16x128xf32>
    %50 = arith.addf %49, %48 : vector<16x128xf32>
    %51 = arith.mulf %43, %50 : vector<16x128xf32>
    %52 = arith.addf %41, %51 : vector<16x128xf32>
    %cst_22 = arith.constant 2.44331568E-5 : f32
    %53 = vector.broadcast %cst_22 : f32 to vector<16x128xf32>
    %54 = arith.mulf %42, %53 : vector<16x128xf32>
    %cst_23 = arith.constant -0.00138873165 : f32
    %55 = vector.broadcast %cst_23 : f32 to vector<16x128xf32>
    %56 = arith.addf %55, %54 : vector<16x128xf32>
    %57 = arith.mulf %42, %56 : vector<16x128xf32>
    %cst_24 = arith.constant 0.0416666456 : f32
    %58 = vector.broadcast %cst_24 : f32 to vector<16x128xf32>
    %59 = arith.addf %58, %57 : vector<16x128xf32>
    %60 = arith.mulf %42, %59 : vector<16x128xf32>
    %cst_25 = arith.constant -5.000000e-01 : f32
    %61 = vector.broadcast %cst_25 : f32 to vector<16x128xf32>
    %62 = arith.addf %61, %60 : vector<16x128xf32>
    %63 = arith.mulf %42, %62 : vector<16x128xf32>
    %cst_26 = arith.constant 1.000000e+00 : f32
    %64 = vector.broadcast %cst_26 : f32 to vector<16x128xf32>
    %65 = arith.addf %64, %63 : vector<16x128xf32>
    %66 = arith.fptosi %35 : vector<16x128xf32> to vector<16x128xi32>
    %c1_i32 = arith.constant 1 : i32
    %67 = vector.broadcast %c1_i32 : i32 to vector<16x128xi32>
    %68 = arith.andi %66, %67 : vector<16x128xi32>
    %c1_i32_27 = arith.constant 1 : i32
    %69 = vector.broadcast %c1_i32_27 : i32 to vector<16x128xi32>
    %70 = arith.cmpi eq, %68, %69 : vector<16x128xi32>
    %c2_i32 = arith.constant 2 : i32
    %71 = vector.broadcast %c2_i32 : i32 to vector<16x128xi32>
    %72 = arith.andi %66, %71 : vector<16x128xi32>
    %c0_i32 = arith.constant 0 : i32
    %73 = vector.broadcast %c0_i32 : i32 to vector<16x128xi32>
    %74 = arith.cmpi eq, %72, %73 : vector<16x128xi32>
    %cst_28 = arith.constant 1.000000e+00 : f32
    %cst_29 = arith.constant -1.000000e+00 : f32
    %75 = vector.broadcast %cst_28 : f32 to vector<16x128xf32>
    %76 = vector.broadcast %cst_29 : f32 to vector<16x128xf32>
    %77 = arith.select %74, %75, %76 : vector<16x128xi1>, vector<16x128xf32>
    %c1_i32_30 = arith.constant 1 : i32
    %78 = vector.broadcast %c1_i32_30 : i32 to vector<16x128xi32>
    %79 = arith.addi %66, %78 : vector<16x128xi32>
    %c2_i32_31 = arith.constant 2 : i32
    %80 = vector.broadcast %c2_i32_31 : i32 to vector<16x128xi32>
    %81 = arith.andi %79, %80 : vector<16x128xi32>
    %c0_i32_32 = arith.constant 0 : i32
    %82 = vector.broadcast %c0_i32_32 : i32 to vector<16x128xi32>
    %83 = arith.cmpi eq, %81, %82 : vector<16x128xi32>
    %cst_33 = arith.constant 1.000000e+00 : f32
    %cst_34 = arith.constant -1.000000e+00 : f32
    %84 = vector.broadcast %cst_33 : f32 to vector<16x128xf32>
    %85 = vector.broadcast %cst_34 : f32 to vector<16x128xf32>
    %86 = arith.select %83, %84, %85 : vector<16x128xi1>, vector<16x128xf32>
    %87 = arith.select %70, %52, %65 : vector<16x128xi1>, vector<16x128xf32>
    %88 = arith.mulf %87, %86 : vector<16x128xf32>
    %89 = arith.select %70, %65, %52 : vector<16x128xi1>, vector<16x128xf32>
    %90 = arith.mulf %89, %77 : vector<16x128xf32>
    %91 = tpu.concatenate %88, %90 in 0 : vector<16x128xf32>, vector<16x128xf32> -> vector<32x128xf32>
    %c16 = arith.constant 16 : index
    %c0_35 = arith.constant 0 : index
    %92 = vector.load %arg2[%c16, %c0_35] : memref<56x32xf32, #tpu.memory_space<vmem>>, vector<32x32xf32>
    %c48 = arith.constant 48 : index
    %c0_36 = arith.constant 0 : index
    %93 = vector.load %arg2[%c48, %c0_36] : memref<56x32xf32, #tpu.memory_space<vmem>>, vector<8x32xf32>
    %cst_37 = arith.constant dense<0.000000e+00> : vector<32x128xf32>
    %94 = tpu.matmul %92, %91, %cst_37 {dimension_numbers = #tpu.dot_dimension_numbers<[1], [0], [0], [1], [0, 0, 1, 1], [], []>} : vector<32x32xf32>, vector<32x128xf32>, vector<32x128xf32> -> vector<32x128xf32>
    %95 = arith.mulf %94, %94 : vector<32x128xf32>
    %cst_38 = arith.constant dense<0.000000e+00> : vector<8x128xf32>
    %96 = tpu.matmul %93, %95, %cst_38 {dimension_numbers = #tpu.dot_dimension_numbers<[1], [0], [0], [1], [0, 0, 1, 1], [], []>} : vector<8x32xf32>, vector<32x128xf32>, vector<8x128xf32> -> vector<8x128xf32>
    %97 = vector.extract_strided_slice %96 {offsets = [0, 0], sizes = [4, 128], strides = [1, 1]} : vector<8x128xf32> to vector<4x128xf32>
    %c0_39 = arith.constant 0 : index
    %c0_40 = arith.constant 0 : index
    %98 = vector.load %arg3[%c0_39, %c0_40] : memref<4x128xf32, #tpu.memory_space<vmem>>, vector<4x128xf32>
    tpu.vector_store %arg3[%c0_39, %c0_40], %97 {strides = array<i32>} : memref<4x128xf32, #tpu.memory_space<vmem>>, vector<4x128xf32>,
    return
  }
  func.func @transform_0(%arg0: i32) -> (i32, i32) {
    %c0_i32 = arith.constant 0 : i32
    %c0_i32_0 = arith.constant 0 : i32
    return %c0_i32, %arg0 : i32, i32
  }
  func.func @transform_1(%arg0: i32) -> (i32, i32) {
    %c0_i32 = arith.constant 0 : i32
    %c0_i32_0 = arith.constant 0 : i32
    %c0_i32_1 = arith.constant 0 : i32
    return %c0_i32, %c0_i32_0 : i32, i32
  }
  func.func @transform_2(%arg0: i32) -> (i32, i32) {
    %c0_i32 = arith.constant 0 : i32
    %c0_i32_0 = arith.constant 0 : i32
    return %c0_i32, %arg0 : i32, i32
  }
}

</mosaic_0001>

<llo_original>
// kernel: q_conv_layer.1
$region0: #{q_conv_layer.1}
  #allocation0 [shape = 'u32[]', space=smem, size = 0x4, offset = 0x4, fixed_abs, tag = 'smem constant byte address 0x4 - core index']
  #allocation1 [shape = 'u32[72,128]{1,0:T(1,128)}', space=vmem, size = 0x9000, scoped, tag = 'internal scratch']
  #allocation2 [shape = 'f32[16,128]{1,0:T(8,128)}', space=vmem, size = 0x2000, scoped, tag = 'scratch operand']
  %s0 = inlined_call_operand.vmem [shape: f32[4,512], index: 0, kind: input, shape index: {}]
  %s1 = inlined_call_operand.vmem [shape: f32[56,32], index: 1, kind: input, shape index: {}]
  %s2 = inlined_call_operand.vmem [shape: f32[4,512], index: 2, kind: output, shape index: {}]
  %s3 = sld [smem:[#allocation0]]
  $region41: #{q_conv_layer.1} parent=0
    _
  %s5 = ssub.s32 1, %s3
  %s6 = scalar_select 0, %s5, %s3
  loop: start=0, step=1, limit=6
  $region2: #{q_conv_layer.1} parent=0 // loop_pre_header
    _
  $region3: #{q_conv_layer.1} parent=0 // loop_header
    %s8 = sphi 0, %s12
    %p9 = scmp.ge.s32.totalorder %s8, 6
    %s18 = sphi 0, %s20
    %s21 = sphi 0, %s18
    %s22 = sphi 0, %s21
    %s38 = sphi 0, %s22
    %s42 = sphi 0, %s42
    %s44 = sphi 0, %s42
    %s45 = sphi 0, %s44
    %s59 = sphi 0, %s45
    %s65 = sphi 0, %s67
    %s68 = sphi 0, %s65
    %s69 = sphi 0, %s68
    %s85 = sphi 0, %s69
  $region4: #{q_conv_layer.1} parent=0 // loop_header_branch
    %11 = sbr.rel (%p9) target = $region8
  $region5: #{q_conv_layer.1} parent=0 // loop_body
    %s13 = ssub.s32 %s8, 1
    %s14 = ssub.s32 %s8, 2
    %s15 = sadd.s32 %s8, 1
    %s16 = ssub.s32 %s8, %s15
    %p17 = scmp.eq.s32.totalorder %s16, 0
    %s19 = sadd.s32 %s18, 1
    %s20 = scalar_select %p17, %s18, %s19
    %p23 = pneg %p17
    %p24 = scmp.eq.s32.totalorder %s8, 3
    %p25 = por %p23, %p24
    %p26 = scmp.ne.s32.totalorder %s18, %s21
    %p27 = scmp.eq.s32.totalorder %s8, 0
    %p28 = por %p26, %p27
    %p29 = scmp.ne.s32.totalorder %s18, %s21
    %p30 = scmp.eq.s32.totalorder %s13, 3
    %p31 = por %p29, %p30
    %p32 = scmp.ne.s32.totalorder %s21, %s22
    %p33 = scmp.eq.s32.totalorder %s13, 0
    %p34 = por %p32, %p33
    %p35 = scmp.ne.s32.totalorder %s21, %s22
    %p36 = scmp.eq.s32.totalorder %s14, 3
    %p37 = por %p35, %p36
    %p39 = scmp.ne.s32.totalorder %s22, %s38
    %p40 = scmp.eq.s32.totalorder %s14, 0
    %p41 = por %p39, %p40
    %s43 = sadd.s32 %s42, 1
    %p46 = scmp.eq.s32.totalorder %s8, 3
    %p47 = scmp.ne.s32.totalorder %s42, %s44
    %p48 = scmp.eq.s32.totalorder %s8, 0
    %p49 = por %p47, %p48
    %p50 = scmp.ne.s32.totalorder %s42, %s44
    %p51 = scmp.eq.s32.totalorder %s13, 3
    %p52 = por %p50, %p51
    %p53 = scmp.ne.s32.totalorder %s44, %s45
    %p54 = scmp.eq.s32.totalorder %s13, 0
    %p55 = por %p53, %p54
    %p56 = scmp.ne.s32.totalorder %s44, %s45
    %p57 = scmp.eq.s32.totalorder %s14, 3
    %p58 = por %p56, %p57
    %p60 = scmp.ne.s32.totalorder %s45, %s59
    %p61 = scmp.eq.s32.totalorder %s14, 0
    %p62 = por %p60, %p61
    %s63 = ssub.s32 %s8, %s15
    %p64 = scmp.eq.s32.totalorder %s63, 0
    %s66 = sadd.s32 %s65, 1
    %s67 = scalar_select %p64, %s65, %s66
    %p70 = pneg %p64
    %p71 = scmp.eq.s32.totalorder %s8, 3
    %p72 = por %p70, %p71
    %p73 = scmp.ne.s32.totalorder %s65, %s68
    %p74 = scmp.eq.s32.totalorder %s8, 0
    %p75 = por %p73, %p74
    %p76 = scmp.ne.s32.totalorder %s65, %s68
    %p77 = scmp.eq.s32.totalorder %s13, 3
    %p78 = por %p76, %p77
    %p79 = scmp.ne.s32.totalorder %s68, %s69
    %p80 = scmp.eq.s32.totalorder %s13, 0
    %p81 = por %p79, %p80
    %p82 = scmp.ne.s32.totalorder %s68, %s69
    %p83 = scmp.eq.s32.totalorder %s14, 3
    %p84 = por %p82, %p83
    %p86 = scmp.ne.s32.totalorder %s69, %s85
    %p87 = scmp.eq.s32.totalorder %s14, 0
    %p88 = por %p86, %p87
    %p89 = scmp.le.s32.totalorder 1, %s8
    %p90 = scmp.lt.s32.totalorder %s8, 5
    %p91 = pnand %p89, %p90
    %p92 = pneg %p91
    // Predicated region
    $region9: #{q_conv_layer.1} parent=5 // pred_check
      _
    $region10: #{q_conv_layer.1} parent=5 // pred_check_branch
      %94 = sbr.rel (%p91) target = $region12
    $region11: #{q_conv_layer.1} parent=5 // pred_region
      %s95 = ssub.s32 %s8, 1
      // Predicated region
      $region13: #{q_conv_layer.1} parent=11 // pred_check
        %p96 = pneg %p55
      $region14: #{q_conv_layer.1} parent=11 // pred_check_branch
        %98 = sbr.rel (%p96) target = $region16
      $region15: #{q_conv_layer.1} parent=11 // pred_region
        _
      $region16: #{q_conv_layer.1} parent=11 // pred_fallthru
        _
    $region12: #{q_conv_layer.1} parent=5 // pred_fallthru
      _
    %p99 = scmp.lt.s32.totalorder %s8, 4
    // Predicated region
    $region17: #{q_conv_layer.1} parent=5 // pred_check
      %p100 = pneg %p99
    $region18: #{q_conv_layer.1} parent=5 // pred_check_branch
      %102 = sbr.rel (%p100) target = $region20
    $region19: #{q_conv_layer.1} parent=5 // pred_region
      // Predicated region
      $region21: #{q_conv_layer.1} parent=19 // pred_check
        %p103 = pneg %p28
      $region22: #{q_conv_layer.1} parent=19 // pred_check_branch
        %105 = sbr.rel (%p103) target = $region24
      $region23: #{q_conv_layer.1} parent=19 // pred_region
        %p106 = scmp.lt.s32.totalorder %s8, 3
        %s107 = scalar_select %p106, %s8, 3
        %s108 = smul.addr %s107, 4
        %s109 = scalar_lea.vmem %s0, %s108
      $region24: #{q_conv_layer.1} parent=19 // pred_fallthru
        _
    $region20: #{q_conv_layer.1} parent=5 // pred_fallthru
      _
    %p110 = scmp.le.s32.totalorder 1, %s8
    %p111 = scmp.lt.s32.totalorder %s8, 5
    %p112 = pnand %p110, %p111
    %p113 = pneg %p112
    // Predicated region
    $region25: #{q_conv_layer.1} parent=5 // pred_check
      _
    $region26: #{q_conv_layer.1} parent=5 // pred_check_branch
      %115 = sbr.rel (%p112) target = $region28
    $region27: #{q_conv_layer.1} parent=5 // pred_region
      %s116 = ssub.s32 %s8, 1
      %p117 = scmp.lt.s32.totalorder %s13, 3
      %s118 = scalar_select %p117, %s13, 3
      %s119 = smul.addr %s118, 4
      %s120 = scalar_lea.vmem %s0, %s119
      %p121 = pneg %p34
      %p122 = pneg %p31
      %p123 = pneg %p55
      %p124 = pneg %p52
      %p125 = pneg %p81
      %p126 = pneg %p78
      %p127 = scmp.lt.s32.totalorder %s13, 3
      %s128 = scalar_select %p127, %s13, 3
      %s129 = smul.addr %s128, 4
      %s130 = scalar_lea.vmem %s2, %s129
      %p131 = scmp.lt.s32.totalorder %s13, 3
      %s132 = scalar_select %p131, %s13, 3
      %s133 = smul.addr %s132, 4
      %s134 = scalar_lea.vmem %s0, %s133
      %p135 = scmp.lt.s32.totalorder %s13, 3
      %s136 = scalar_select %p135, %s13, 3
      %s137 = smul.addr %s136, 4
      %s138 = scalar_lea.vmem %s2, %s137
      %v139 = vld [vmem:[%s134] sm:$0xf]
      %140 = vst [vmem:[#allocation2] sm:$0xf] %v139
      %v142 = vrot.slane %v139, 1
      %v144 = vmul.f32 %v139, %v142
      %145 = vst [vmem:[#allocation2 + $0x4] sm:$0x1] %v144
      %v146 = vrot.slane %v139, 2
      %v148 = vmul.f32 %v139, %v146
      %149 = vst [vmem:[#allocation2 + $0x5] sm:$0x1] %v148
      %v150 = vrot.slane %v139, 3
      %v152 = vmul.f32 %v139, %v150
      %153 = vst [vmem:[#allocation2 + $0x6] sm:$0x1] %v152
      %154 = vst [vmem:[#allocation2 + $0x6] sm:$0x2] %v144
      %155 = vst [vmem:[#allocation2 + $0x7] sm:$0x2] %v148
      %156 = vst [vmem:[#allocation2 + $0x7] sm:$0x4] %v144
      %157 = vst [vmem:[#allocation2 + $0xa] sm:$0x3f] 0.0
      %v158 = vld [vmem:[%s1] sm:$0xff]
      %v159 = vld [vmem:[%s1 + $0x8] sm:$0xff]
      %v160 = vld [vmem:[#allocation2] sm:$0xff]
      %v161 = vld [vmem:[#allocation2 + $0x8] sm:$0xff]
      %vm162 = vcmask 130048
      %v164 = vsel %vm162, %v158, 0
      %v167 = vsel %vm162, %v159, 0
      %169 = vmatpush.msra.mxu0 0.0
      %170 = vmatpush.msra.mxu0 0.0
      %171 = vmatpush.msra.mxu0 0.0
      %172 = vmatpush.msra.mxu0 0.0
      %173 = vmatpush.msra.mxu0 0.0
      %174 = vmatpush.msra.mxu0 0.0
      %175 = vmatpush.msra.mxu0 0.0
      %176 = vmatpush.msra.mxu0 0.0
      %177 = vmatpush.msra.mxu0 0.0
      %178 = vmatpush.msra.mxu0 0.0
      %179 = vmatpush.msra.mxu0 0.0
      %180 = vmatpush.msra.mxu0 0.0
      %181 = vmatpush.msra.mxu0 0.0
      %182 = vmatpush.msra.mxu0 0.0
      %183 = vmatpush.msra.mxu0 %v161
      %184 = vmatpush.msra.mxu0 %v160
      %185 = vmatmul.f32.gmra.mxu0 %v164
      %v186 = vpop.f32.mrf.mxu0
      %v187 = vadd.f32 0.0, %v186
      %188 = vmatmul.f32.gmra.mxu0 %v167
      %v189 = vpop.f32.mrf.mxu0
      %v190 = vadd.f32 0.0, %v189
      %191 = vdwg.mxu0
      %v192 = vmul.f32 %v187, 0.63661975
      %v193 = vmul.f32 %v190, 0.63661975
      %v194 = vadd.f32 %v192, 0.5
      %v195 = vadd.f32 %v193, 0.5
      %v196 = vfloor.f32 %v194
      %v197 = vfloor.f32 %v195
      %v198 = vmul.f32 %v196, 1.5707964
      %v199 = vmul.f32 %v197, 1.5707964
      %v200 = vsub.f32 %v187, %v198
      %v201 = vsub.f32 %v190, %v199
      %v202 = vmul.f32 %v196, -4.371139e-08
      %v203 = vmul.f32 %v197, -4.371139e-08
      %v204 = vsub.f32 %v200, %v202
      %v205 = vsub.f32 %v201, %v203
      %v206 = vmul.f32 %v204, %v204
      %v207 = vmul.f32 %v205, %v205
      %v208 = vmul.f32 %v204, %v206
      %v209 = vmul.f32 %v205, %v207
      %v210 = vmul.f32 %v206, -0.00019515296
      %v211 = vmul.f32 %v207, -0.00019515296
      %v212 = vadd.f32 %v210, 0.008332161
      %v213 = vadd.f32 %v211, 0.008332161
      %v214 = vmul.f32 %v206, %v212
      %v215 = vmul.f32 %v207, %v213
      %v216 = vadd.f32 %v214, -0.16666655
      %v217 = vadd.f32 %v215, -0.16666655
      %v218 = vmul.f32 %v208, %v216
      %v219 = vmul.f32 %v209, %v217
      %v220 = vadd.f32 %v204, %v218
      %v221 = vadd.f32 %v205, %v219
      %v222 = vmul.f32 %v206, 2.4433157e-05
      %v223 = vmul.f32 %v207, 2.4433157e-05
      %v224 = vadd.f32 %v222, -0.0013887316
      %v225 = vadd.f32 %v223, -0.0013887316
      %v226 = vmul.f32 %v206, %v224
      %v227 = vmul.f32 %v207, %v225
      %v228 = vadd.f32 %v226, 0.041666646
      %v229 = vadd.f32 %v227, 0.041666646
      %v230 = vmul.f32 %v206, %v228
      %v231 = vmul.f32 %v207, %v229
      %v232 = vadd.f32 %v230, -0.5
      %v233 = vadd.f32 %v231, -0.5
      %v234 = vmul.f32 %v206, %v232
      %v235 = vmul.f32 %v207, %v233
      %v236 = vadd.f32 %v234, 1.0
      %v237 = vadd.f32 %v235, 1.0
      %v238 = vcvt.f32.s32.to.zero.pseudo %v196
      %v239 = vcvt.f32.s32.to.zero.pseudo %v197
      %v240 = vand.u32 %v238, 1
      %v241 = vand.u32 %v239, 1
      %vm242 = vcmp.eq.s32.totalorder %v240, 1
      %vm243 = vcmp.eq.s32.totalorder %v241, 1
      %v244 = vand.u32 %v238, 2
      %v245 = vand.u32 %v239, 2
      %vm246 = vcmp.eq.s32.totalorder %v244, 0
      %vm247 = vcmp.eq.s32.totalorder %v245, 0
      %v248 = vsel %vm246, 1.0, -1.0
      %v249 = vsel %vm247, 1.0, -1.0
      %v250 = vadd.s32 %v238, 1
      %v251 = vadd.s32 %v239, 1
      %v252 = vand.u32 %v250, 2
      %v253 = vand.u32 %v251, 2
      %vm254 = vcmp.eq.s32.totalorder %v252, 0
      %vm255 = vcmp.eq.s32.totalorder %v253, 0
      %v256 = vsel %vm254, 1.0, -1.0
      %v257 = vsel %vm255, 1.0, -1.0
      %v258 = vsel %vm242, %v220, %v236
      %v259 = vsel %vm243, %v221, %v237
      %v260 = vmul.f32 %v258, %v256
      %v261 = vmul.f32 %v259, %v257
      %v262 = vsel %vm242, %v236, %v220
      %v263 = vsel %vm243, %v237, %v221
      %v264 = vmul.f32 %v262, %v248
      %v265 = vmul.f32 %v263, %v249
      %v266 = vld [vmem:[%s1 + $0x10] sm:$0xff]
      %v267 = vld [vmem:[%s1 + $0x18] sm:$0xff]
      %v268 = vld [vmem:[%s1 + $0x20] sm:$0xff]
      %v269 = vld [vmem:[%s1 + $0x28] sm:$0xff]
      %v270 = vld [vmem:[%s1 + $0x30] sm:$0xff]
      %vm271 = vcmask 261120
      %v273 = vsel %vm271, %v266, 0
      %v276 = vsel %vm271, %v267, 0
      %v279 = vsel %vm271, %v268, 0
      %v282 = vsel %vm271, %v269, 0
      %284 = vmatpush.msra.mxu0 0.0
      %285 = vmatpush.msra.mxu0 0.0
      %286 = vmatpush.msra.mxu0 0.0
      %287 = vmatpush.msra.mxu0 0.0
      %288 = vmatpush.msra.mxu0 0.0
      %289 = vmatpush.msra.mxu0 0.0
      %290 = vmatpush.msra.mxu0 0.0
      %291 = vmatpush.msra.mxu0 0.0
      %292 = vmatpush.msra.mxu0 0.0
      %293 = vmatpush.msra.mxu0 0.0
      %294 = vmatpush.msra.mxu0 0.0
      %295 = vmatpush.msra.mxu0 0.0
      %296 = vmatpush.msra.mxu0 %v265
      %297 = vmatpush.msra.mxu0 %v264
      %298 = vmatpush.msra.mxu0 %v261
      %299 = vmatpush.msra.mxu0 %v260
      %300 = vmatmul.f32.gmra.mxu0 %v273
      %v301 = vpop.f32.mrf.mxu0
      %v302 = vadd.f32 0.0, %v301
      %303 = vmatmul.f32.gmra.mxu0 %v276
      %v304 = vpop.f32.mrf.mxu0
      %v305 = vadd.f32 0.0, %v304
      %306 = vmatmul.f32.gmra.mxu0 %v279
      %v307 = vpop.f32.mrf.mxu0
      %v308 = vadd.f32 0.0, %v307
      %309 = vmatmul.f32.gmra.mxu0 %v282
      %v310 = vpop.f32.mrf.mxu0
      %v311 = vadd.f32 0.0, %v310
      %312 = vdwg.mxu0
      %v313 = vmul.f32 %v302, %v302
      %v314 = vmul.f32 %v305, %v305
      %v315 = vmul.f32 %v308, %v308
      %v316 = vmul.f32 %v311, %v311
      %v318 = vsel %vm271, %v270, 0
      %320 = vmatpush.msra.mxu0 0.0
      %321 = vmatpush.msra.mxu0 0.0
      %322 = vmatpush.msra.mxu0 0.0
      %323 = vmatpush.msra.mxu0 0.0
      %324 = vmatpush.msra.mxu0 0.0
      %325 = vmatpush.msra.mxu0 0.0
      %326 = vmatpush.msra.mxu0 0.0
      %327 = vmatpush.msra.mxu0 0.0
      %328 = vmatpush.msra.mxu0 0.0
      %329 = vmatpush.msra.mxu0 0.0
      %330 = vmatpush.msra.mxu0 0.0
      %331 = vmatpush.msra.mxu0 0.0
      %332 = vmatpush.msra.mxu0 %v316
      %333 = vmatpush.msra.mxu0 %v315
      %334 = vmatpush.msra.mxu0 %v314
      %335 = vmatpush.msra.mxu0 %v313
      %336 = vmatmul.f32.gmra.mxu0 %v318
      %v337 = vpop.f32.mrf.mxu0
      %v338 = vadd.f32 0.0, %v337
      %339 = vdwg.mxu0
      %340 = vst [vmem:[%s138] sm:$0xf] %v338
      %p341 = scmp.lt.s32.totalorder %s13, 3
      %s342 = scalar_select %p341, %s13, 3
      %s343 = smul.addr %s342, 4
      %s344 = scalar_lea.vmem %s2, %s343
      // Predicated region
      $region29: #{q_conv_layer.1} parent=27 // pred_check
        %p345 = pneg %p78
      $region30: #{q_conv_layer.1} parent=27 // pred_check_branch
        %347 = sbr.rel (%p345) target = $region32
      $region31: #{q_conv_layer.1} parent=27 // pred_region
        _
      $region32: #{q_conv_layer.1} parent=27 // pred_fallthru
        _
    $region28: #{q_conv_layer.1} parent=5 // pred_fallthru
      _
    %p348 = scmp.le.s32.totalorder 2, %s8
    // Predicated region
    $region33: #{q_conv_layer.1} parent=5 // pred_check
      %p349 = pneg %p348
    $region34: #{q_conv_layer.1} parent=5 // pred_check_branch
      %351 = sbr.rel (%p349) target = $region36
    $region35: #{q_conv_layer.1} parent=5 // pred_region
      %s352 = ssub.s32 %s8, 2
      // Predicated region
      $region37: #{q_conv_layer.1} parent=35 // pred_check
        %p353 = pneg %p84
      $region38: #{q_conv_layer.1} parent=35 // pred_check_branch
        %355 = sbr.rel (%p353) target = $region40
      $region39: #{q_conv_layer.1} parent=35 // pred_region
        %p356 = scmp.lt.s32.totalorder %s14, 3
        %s357 = scalar_select %p356, %s14, 3
        %s358 = smul.addr %s357, 4
        %s359 = scalar_lea.vmem %s2, %s358
      $region40: #{q_conv_layer.1} parent=35 // pred_fallthru
        _
    $region36: #{q_conv_layer.1} parent=5 // pred_fallthru
      _
  $region6: #{q_conv_layer.1} parent=0 // loop_footer
    %s12 = sadd.s32 1, %s8
  $region7: #{q_conv_layer.1} parent=0 // loop_footer_branch
    %7 = sbr.rel target = $region3
  $region8: #{q_conv_layer.1} parent=0 // loop_exit
    _

</llo_original>
